<compile_context>
chip_gen: v6e
topology: v6e:2x2x1
jax: 0.10.0
libtpu: 0.0.40
codegen_flags: <defaults>
</compile_context>

<pallas_src>
import functools

import jax
import jax.numpy as jnp
from jax.experimental import pallas as pl
from jax.experimental.pallas import tpu as pltpu


def _round_up(n, m):
    return ((n + m - 1) // m) * m


def _make_mlp_kernel(num_matmuls):
    """Build a kernel closed over the (static) number of weight matrices."""

    def kernel(*refs):
        # refs = [X, Wt_0..Wt_{L-1}, bt_0..bt_{L-1}, uv_out]
        x_ref = refs[0]
        wt_refs = refs[1:1 + num_matmuls]
        bt_refs = refs[1 + num_matmuls:1 + 2 * num_matmuls]
        out_ref = refs[-1]

        # Batch lives on the lane axis: h is (features, TM) throughout.
        h = x_ref[...]                                           # (2, TM)

        # Hidden layers: tanh(W^T @ h + b^T).  The normalization FMA was
        # folded into Wt_0 / bt_0 in the wrapper.
        for l in range(num_matmuls - 1):
            h = jnp.tanh(
                jnp.dot(wt_refs[l][...], h,
                        preferred_element_type=jnp.float32)
                + bt_refs[l][...]
            )

        # Final linear layer -> (2, TM): row 0 = u, row 1 = v (lane-dense).
        out_ref[...] = (
            jnp.dot(wt_refs[-1][...], h, preferred_element_type=jnp.float32)
            + bt_refs[-1][...]
        )

    return kernel


@functools.partial(jax.jit, static_argnames=("tm",))
def pinn_forward(x, y, lb, ub, weights, biases, *, tm=1024):
    """Pallas forward pass of PhysicsInformedNN.NN_model.

    Args:
      x, y:    (N, 1) float32 coordinate columns.
      lb, ub:  (1, 2) float32 domain bounds.
      weights: list of (d_l, d_{l+1}) float32 matrices.
      biases:  list of (1, d_{l+1}) float32 rows.
      tm:      max batch tile size (multiple of 128; wrapper pads N).

    Returns:
      (u, v): each (N, 1) float32.
    """
    n = x.shape[0]
    num_matmuls = len(weights)
    out_dim = weights[-1].shape[1]   # = 2 (u, v)

    # Batch tile: multiple of 128 (lane width), capped at `tm`.
    tm_eff = min(tm, _round_up(n, 128))
    n_pad = _round_up(n, tm_eff)

    # Glue (layout plumbing): feature-major input (2, N_pad), batch on lanes.
    xy_t = jnp.concatenate([x, y], axis=1).T                    # (2, N)
    if n_pad != n:
        xy_t = jnp.pad(xy_t, ((0, 0), (0, n_pad - n)))

    # Fold the min-max normalization ( -1 + 2*(X-lb)/(ub-lb) == X*scale+shift )
    # into the first layer's (transposed) weights / bias.
    scale = (2.0 / (ub - lb)).T                                 # (2, 1)
    shift = (-1.0 - 2.0 * lb / (ub - lb)).T                     # (2, 1)

    w0t = weights[0].T                                          # (d1, 2)
    b0t = biases[0].T + w0t @ shift                             # (d1, 1)
    w0t = w0t * scale.reshape(1, -1)                            # (d1, 2)

    wts = [w0t] + [w.T for w in weights[1:]]                    # (d_out, d_in)
    bts = [b0t] + [b.T for b in biases[1:]]                     # (d_out, 1)

    kernel = _make_mlp_kernel(num_matmuls)

    in_specs = [
        pl.BlockSpec((2, tm_eff), lambda i: (0, i)),            # X tile
    ]
    # Weights / biases: full-array blocks, replicated across the batch grid.
    for wt in wts:
        in_specs.append(pl.BlockSpec(wt.shape, lambda i: (0, 0)))
    for bt in bts:
        in_specs.append(pl.BlockSpec(bt.shape, lambda i: (0, 0)))

    out_specs = pl.BlockSpec((out_dim, tm_eff), lambda i: (0, i))
    out_shape = jax.ShapeDtypeStruct((out_dim, n_pad), jnp.float32)

    grid = (n_pad // tm_eff,)

    uv_t = pl.pallas_call(
        kernel,
        out_shape=out_shape,
        grid_spec=pltpu.PrefetchScalarGridSpec(
            num_scalar_prefetch=0,
            grid=grid,
            in_specs=in_specs,
            out_specs=out_specs,
        ),
        compiler_params=pltpu.CompilerParams(
            dimension_semantics=("parallel",)
        ),
    )(xy_t, *wts, *bts)

    uv = uv_t[:, :n].T                                          # (N, 2)
    return uv[:, 0:1], uv[:, 1:2]


def xavier_normal_init(key, fan_in, fan_out):
    """Deterministic Xavier-normal init (matches nn.init.xavier_normal_)."""
    std = (2.0 / (fan_in + fan_out)) ** 0.5
    return std * jax.random.normal(key, (fan_in, fan_out), dtype=jnp.float32)


def reference_forward(x, y, lb, ub, weights, biases):
    """Pure-JAX reference of NN_model for a correctness check."""
    h = jnp.concatenate([x, y], axis=1)
    h = -1.0 + 2.0 * (h - lb) / (ub - lb)
    for w, b in zip(weights[:-1], biases[:-1]):
        h = jnp.tanh(h @ w + b)
    yv = h @ weights[-1] + biases[-1]
    return yv[:, 0:1], yv[:, 1:2]


if __name__ == "__main__":
    # Small, deterministic configuration consistent with the module:
    # layers = [2, 32, 32, 32, 2]  (input = (x, y), output = (u, v))
    layers = [2, 32, 32, 32, 2]
    n_points = 300  # exercises padding + a multi-tile grid with tm=128

    key = jax.random.PRNGKey(0)
    k_x, k_y, *k_w = jax.random.split(key, 2 + len(layers) - 1)

    # Coordinates inside the domain [0, 170] x [0, 170] (as in the PDE setup).
    x = jax.random.uniform(k_x, (n_points, 1), jnp.float32, 0.0, 170.0)
    y = jax.random.uniform(k_y, (n_points, 1), jnp.float32, 0.0, 170.0)

    lb = jnp.array([[0.0, 0.0]], dtype=jnp.float32)
    ub = jnp.array([[170.0, 170.0]], dtype=jnp.float32)

    weights = [
        xavier_normal_init(k_w[l], layers[l], layers[l + 1])
        for l in range(len(layers) - 1)
    ]
    biases = [
        jnp.zeros((1, layers[l + 1]), dtype=jnp.float32)
        for l in range(len(layers) - 1)
    ]

    u, v = pinn_forward(x, y, lb, ub, weights, biases, tm=128)
    jax.block_until_ready((u, v))

    # Cross-check against the pure-JAX reference.
    u_ref, v_ref = reference_forward(x, y, lb, ub, weights, biases)
    assert u.shape == (n_points, 1) and v.shape == (n_points, 1)
    assert jnp.allclose(u, u_ref, atol=1e-4, rtol=1e-3), (
        float(jnp.max(jnp.abs(u - u_ref))))
    assert jnp.allclose(v, v_ref, atol=1e-4, rtol=1e-3), (
        float(jnp.max(jnp.abs(v - v_ref))))

    print("KERNEL_OK")
</pallas_src>

<mosaic_0001>
module attributes {stable_mosaic.version = 11 : i64} {
  func.func @kernel(%arg0: i32, %arg1: memref<2x128xf32, #tpu.memory_space<vmem>>, %arg2: memref<32x2xf32, #tpu.memory_space<vmem>>, %arg3: memref<32x32xf32, #tpu.memory_space<vmem>>, %arg4: memref<32x32xf32, #tpu.memory_space<vmem>>, %arg5: memref<2x32xf32, #tpu.memory_space<vmem>>, %arg6: memref<32x1xf32, #tpu.memory_space<vmem>>, %arg7: memref<32x1xf32, #tpu.memory_space<vmem>>, %arg8: memref<32x1xf32, #tpu.memory_space<vmem>>, %arg9: memref<2x1xf32, #tpu.memory_space<vmem>>, %arg10: memref<2x128xf32, #tpu.memory_space<vmem>>) attributes {dimension_semantics = [#tpu.dimension_semantics<parallel>], iteration_bounds = array<i64: 3>, scalar_prefetch = 0 : i64, scratch_operands = 0 : i64, tpu.core_type = #tpu.core_type<tc>, window_params = [{transform_indices = @transform_0, window_bounds = array<i64: 2, 128>}, {pipeline_mode = #tpu.pipeline_mode<synchronous>, transform_indices = @transform_1, window_bounds = array<i64: 32, 2>}, {pipeline_mode = #tpu.pipeline_mode<synchronous>, transform_indices = @transform_2, window_bounds = array<i64: 32, 32>}, {pipeline_mode = #tpu.pipeline_mode<synchronous>, transform_indices = @transform_3, window_bounds = array<i64: 32, 32>}, {pipeline_mode = #tpu.pipeline_mode<synchronous>, transform_indices = @transform_4, window_bounds = array<i64: 2, 32>}, {pipeline_mode = #tpu.pipeline_mode<synchronous>, transform_indices = @transform_5, window_bounds = array<i64: 32, 1>}, {pipeline_mode = #tpu.pipeline_mode<synchronous>, transform_indices = @transform_6, window_bounds = array<i64: 32, 1>}, {pipeline_mode = #tpu.pipeline_mode<synchronous>, transform_indices = @transform_7, window_bounds = array<i64: 32, 1>}, {pipeline_mode = #tpu.pipeline_mode<synchronous>, transform_indices = @transform_8, window_bounds = array<i64: 2, 1>}, {transform_indices = @transform_9, window_bounds = array<i64: 2, 128>}]} {
    %c0 = arith.constant 0 : index
    %c0_0 = arith.constant 0 : index
    %0 = vector.load %arg1[%c0, %c0_0] : memref<2x128xf32, #tpu.memory_space<vmem>>, vector<2x128xf32>
    %c0_1 = arith.constant 0 : index
    %c0_2 = arith.constant 0 : index
    %1 = vector.load %arg2[%c0_1, %c0_2] : memref<32x2xf32, #tpu.memory_space<vmem>>, vector<32x2xf32>
    %cst = arith.constant dense<0.000000e+00> : vector<32x128xf32>
    %2 = tpu.matmul %1, %0, %cst {dimension_numbers = #tpu.dot_dimension_numbers<[1], [0], [0], [1], [0, 0, 1, 1], [], []>} : vector<32x2xf32>, vector<2x128xf32>, vector<32x128xf32> -> vector<32x128xf32>
    %c0_3 = arith.constant 0 : index
    %c0_4 = arith.constant 0 : index
    %3 = vector.load %arg6[%c0_3, %c0_4] : memref<32x1xf32, #tpu.memory_space<vmem>>, vector<32x1xf32>
    %4 = vector.broadcast %3 : vector<32x1xf32> to vector<32x128xf32>
    %5 = arith.addf %2, %4 : vector<32x128xf32>
    %6 = math.tanh %5 : vector<32x128xf32>
    %c0_5 = arith.constant 0 : index
    %c0_6 = arith.constant 0 : index
    %7 = vector.load %arg3[%c0_5, %c0_6] : memref<32x32xf32, #tpu.memory_space<vmem>>, vector<32x32xf32>
    %cst_7 = arith.constant dense<0.000000e+00> : vector<32x128xf32>
    %8 = tpu.matmul %7, %6, %cst_7 {dimension_numbers = #tpu.dot_dimension_numbers<[1], [0], [0], [1], [0, 0, 1, 1], [], []>} : vector<32x32xf32>, vector<32x128xf32>, vector<32x128xf32> -> vector<32x128xf32>
    %c0_8 = arith.constant 0 : index
    %c0_9 = arith.constant 0 : index
    %9 = vector.load %arg7[%c0_8, %c0_9] : memref<32x1xf32, #tpu.memory_space<vmem>>, vector<32x1xf32>
    %10 = vector.broadcast %9 : vector<32x1xf32> to vector<32x128xf32>
    %11 = arith.addf %8, %10 : vector<32x128xf32>
    %12 = math.tanh %11 : vector<32x128xf32>
    %c0_10 = arith.constant 0 : index
    %c0_11 = arith.constant 0 : index
    %13 = vector.load %arg4[%c0_10, %c0_11] : memref<32x32xf32, #tpu.memory_space<vmem>>, vector<32x32xf32>
    %cst_12 = arith.constant dense<0.000000e+00> : vector<32x128xf32>
    %14 = tpu.matmul %13, %12, %cst_12 {dimension_numbers = #tpu.dot_dimension_numbers<[1], [0], [0], [1], [0, 0, 1, 1], [], []>} : vector<32x32xf32>, vector<32x128xf32>, vector<32x128xf32> -> vector<32x128xf32>
    %c0_13 = arith.constant 0 : index
    %c0_14 = arith.constant 0 : index
    %15 = vector.load %arg8[%c0_13, %c0_14] : memref<32x1xf32, #tpu.memory_space<vmem>>, vector<32x1xf32>
    %16 = vector.broadcast %15 : vector<32x1xf32> to vector<32x128xf32>
    %17 = arith.addf %14, %16 : vector<32x128xf32>
    %18 = math.tanh %17 : vector<32x128xf32>
    %c0_15 = arith.constant 0 : index
    %c0_16 = arith.constant 0 : index
    %19 = vector.load %arg5[%c0_15, %c0_16] : memref<2x32xf32, #tpu.memory_space<vmem>>, vector<2x32xf32>
    %cst_17 = arith.constant dense<0.000000e+00> : vector<2x128xf32>
    %20 = tpu.matmul %19, %18, %cst_17 {dimension_numbers = #tpu.dot_dimension_numbers<[1], [0], [0], [1], [0, 0, 1, 1], [], []>} : vector<2x32xf32>, vector<32x128xf32>, vector<2x128xf32> -> vector<2x128xf32>
    %c0_18 = arith.constant 0 : index
    %c0_19 = arith.constant 0 : index
    %21 = vector.load %arg9[%c0_18, %c0_19] : memref<2x1xf32, #tpu.memory_space<vmem>>, vector<2x1xf32>
    %22 = vector.broadcast %21 : vector<2x1xf32> to vector<2x128xf32>
    %23 = arith.addf %20, %22 : vector<2x128xf32>
    %c0_20 = arith.constant 0 : index
    %c0_21 = arith.constant 0 : index
    %24 = vector.load %arg10[%c0_20, %c0_21] : memref<2x128xf32, #tpu.memory_space<vmem>>, vector<2x128xf32>
    tpu.vector_store %arg10[%c0_20, %c0_21], %23 {strides = array<i32>} : memref<2x128xf32, #tpu.memory_space<vmem>>, vector<2x128xf32>,
    return
  }
  func.func @transform_0(%arg0: i32) -> (i32, i32) {
    %c0_i32 = arith.constant 0 : i32
    %c0_i32_0 = arith.constant 0 : i32
    return %c0_i32, %arg0 : i32, i32
  }
  func.func @transform_1(%arg0: i32) -> (i32, i32) {
    %c0_i32 = arith.constant 0 : i32
    %c0_i32_0 = arith.constant 0 : i32
    %c0_i32_1 = arith.constant 0 : i32
    return %c0_i32, %c0_i32_0 : i32, i32
  }
  func.func @transform_2(%arg0: i32) -> (i32, i32) {
    %c0_i32 = arith.constant 0 : i32
    %c0_i32_0 = arith.constant 0 : i32
    %c0_i32_1 = arith.constant 0 : i32
    return %c0_i32, %c0_i32_0 : i32, i32
  }
  func.func @transform_3(%arg0: i32) -> (i32, i32) {
    %c0_i32 = arith.constant 0 : i32
    %c0_i32_0 = arith.constant 0 : i32
    %c0_i32_1 = arith.constant 0 : i32
    return %c0_i32, %c0_i32_0 : i32, i32
  }
  func.func @transform_4(%arg0: i32) -> (i32, i32) {
    %c0_i32 = arith.constant 0 : i32
    %c0_i32_0 = arith.constant 0 : i32
    %c0_i32_1 = arith.constant 0 : i32
    return %c0_i32, %c0_i32_0 : i32, i32
  }
  func.func @transform_5(%arg0: i32) -> (i32, i32) {
    %c0_i32 = arith.constant 0 : i32
    %c0_i32_0 = arith.constant 0 : i32
    %c0_i32_1 = arith.constant 0 : i32
    return %c0_i32, %c0_i32_0 : i32, i32
  }
  func.func @transform_6(%arg0: i32) -> (i32, i32) {
    %c0_i32 = arith.constant 0 : i32
    %c0_i32_0 = arith.constant 0 : i32
    %c0_i32_1 = arith.constant 0 : i32
    return %c0_i32, %c0_i32_0 : i32, i32
  }
  func.func @transform_7(%arg0: i32) -> (i32, i32) {
    %c0_i32 = arith.constant 0 : i32
    %c0_i32_0 = arith.constant 0 : i32
    %c0_i32_1 = arith.constant 0 : i32
    return %c0_i32, %c0_i32_0 : i32, i32
  }
  func.func @transform_8(%arg0: i32) -> (i32, i32) {
    %c0_i32 = arith.constant 0 : i32
    %c0_i32_0 = arith.constant 0 : i32
    %c0_i32_1 = arith.constant 0 : i32
    return %c0_i32, %c0_i32_0 : i32, i32
  }
  func.func @transform_9(%arg0: i32) -> (i32, i32) {
    %c0_i32 = arith.constant 0 : i32
    %c0_i32_0 = arith.constant 0 : i32
    return %c0_i32, %arg0 : i32, i32
  }
}

</mosaic_0001>

<llo_original>
// kernel: pinn_forward.1
$region0: #{pinn_forward.1}
  #allocation0 [shape = 'u32[]', space=smem, size = 0x4, offset = 0x4, fixed_abs, tag = 'smem constant byte address 0x4 - core index']
  #allocation1 [shape = 'u32[144,128]{1,0:T(1,128)}', space=vmem, size = 0x12000, scoped, tag = 'internal scratch']
  %s0 = inlined_call_operand.vmem [shape: f32[2,384], index: 0, kind: input, shape index: {}]
  %s1 = inlined_call_operand.vmem [shape: f32[32,2], index: 1, kind: input, shape index: {}]
  %s2 = inlined_call_operand.vmem [shape: f32[32,32], index: 2, kind: input, shape index: {}]
  %s3 = inlined_call_operand.vmem [shape: f32[32,32], index: 3, kind: input, shape index: {}]
  %s4 = inlined_call_operand.vmem [shape: f32[2,32], index: 4, kind: input, shape index: {}]
  %s5 = inlined_call_operand.vmem [shape: f32[32,1], index: 5, kind: input, shape index: {}]
  %s6 = inlined_call_operand.vmem [shape: f32[32,1], index: 6, kind: input, shape index: {}]
  %s7 = inlined_call_operand.vmem [shape: f32[32,1], index: 7, kind: input, shape index: {}]
  %s8 = inlined_call_operand.vmem [shape: f32[2,1], index: 8, kind: input, shape index: {}]
  %s9 = inlined_call_operand.vmem [shape: f32[2,384], index: 9, kind: output, shape index: {}]
  %s10 = sld [smem:[#allocation0]]
  $region69: #{pinn_forward.1} parent=0
    _
  %s12 = ssub.s32 1, %s10
  %s13 = scalar_select 0, %s12, %s10
  loop: start=0, step=1, limit=5
  $region2: #{pinn_forward.1} parent=0 // loop_pre_header
    _
  $region3: #{pinn_forward.1} parent=0 // loop_header
    %s15 = sphi 0, %s19
    %p16 = scmp.ge.s32.totalorder %s15, 5
    %s25 = sphi 0, %s27
    %s28 = sphi 0, %s25
    %s29 = sphi 0, %s28
    %s45 = sphi 0, %s29
    %s49 = sphi 0, %s49
    %s51 = sphi 0, %s49
    %s52 = sphi 0, %s51
    %s66 = sphi 0, %s52
    %s70 = sphi 0, %s70
    %s72 = sphi 0, %s70
    %s73 = sphi 0, %s72
    %s87 = sphi 0, %s73
    %s91 = sphi 0, %s91
    %s93 = sphi 0, %s91
    %s94 = sphi 0, %s93
    %s108 = sphi 0, %s94
    %s112 = sphi 0, %s112
    %s114 = sphi 0, %s112
    %s115 = sphi 0, %s114
    %s129 = sphi 0, %s115
    %s133 = sphi 0, %s133
    %s135 = sphi 0, %s133
    %s136 = sphi 0, %s135
    %s150 = sphi 0, %s136
    %s154 = sphi 0, %s154
    %s156 = sphi 0, %s154
    %s157 = sphi 0, %s156
    %s171 = sphi 0, %s157
    %s175 = sphi 0, %s175
    %s177 = sphi 0, %s175
    %s178 = sphi 0, %s177
    %s192 = sphi 0, %s178
    %s196 = sphi 0, %s196
    %s198 = sphi 0, %s196
    %s199 = sphi 0, %s198
    %s213 = sphi 0, %s199
    %s219 = sphi 0, %s221
    %s222 = sphi 0, %s219
    %s223 = sphi 0, %s222
    %s239 = sphi 0, %s223
  $region4: #{pinn_forward.1} parent=0 // loop_header_branch
    %18 = sbr.rel (%p16) target = $region8
  $region5: #{pinn_forward.1} parent=0 // loop_body
    %s20 = ssub.s32 %s15, 1
    %s21 = ssub.s32 %s15, 2
    %s22 = sadd.s32 %s15, 1
    %s23 = ssub.s32 %s15, %s22
    %p24 = scmp.eq.s32.totalorder %s23, 0
    %s26 = sadd.s32 %s25, 1
    %s27 = scalar_select %p24, %s25, %s26
    %p30 = pneg %p24
    %p31 = scmp.eq.s32.totalorder %s15, 2
    %p32 = por %p30, %p31
    %p33 = scmp.ne.s32.totalorder %s25, %s28
    %p34 = scmp.eq.s32.totalorder %s15, 0
    %p35 = por %p33, %p34
    %p36 = scmp.ne.s32.totalorder %s25, %s28
    %p37 = scmp.eq.s32.totalorder %s20, 2
    %p38 = por %p36, %p37
    %p39 = scmp.ne.s32.totalorder %s28, %s29
    %p40 = scmp.eq.s32.totalorder %s20, 0
    %p41 = por %p39, %p40
    %p42 = scmp.ne.s32.totalorder %s28, %s29
    %p43 = scmp.eq.s32.totalorder %s21, 2
    %p44 = por %p42, %p43
    %p46 = scmp.ne.s32.totalorder %s29, %s45
    %p47 = scmp.eq.s32.totalorder %s21, 0
    %p48 = por %p46, %p47
    %s50 = sadd.s32 %s49, 1
    %p53 = scmp.eq.s32.totalorder %s15, 2
    %p54 = scmp.ne.s32.totalorder %s49, %s51
    %p55 = scmp.eq.s32.totalorder %s15, 0
    %p56 = por %p54, %p55
    %p57 = scmp.ne.s32.totalorder %s49, %s51
    %p58 = scmp.eq.s32.totalorder %s20, 2
    %p59 = por %p57, %p58
    %p60 = scmp.ne.s32.totalorder %s51, %s52
    %p61 = scmp.eq.s32.totalorder %s20, 0
    %p62 = por %p60, %p61
    %p63 = scmp.ne.s32.totalorder %s51, %s52
    %p64 = scmp.eq.s32.totalorder %s21, 2
    %p65 = por %p63, %p64
    %p67 = scmp.ne.s32.totalorder %s52, %s66
    %p68 = scmp.eq.s32.totalorder %s21, 0
    %p69 = por %p67, %p68
    %s71 = sadd.s32 %s70, 1
    %p74 = scmp.eq.s32.totalorder %s15, 2
    %p75 = scmp.ne.s32.totalorder %s70, %s72
    %p76 = scmp.eq.s32.totalorder %s15, 0
    %p77 = por %p75, %p76
    %p78 = scmp.ne.s32.totalorder %s70, %s72
    %p79 = scmp.eq.s32.totalorder %s20, 2
    %p80 = por %p78, %p79
    %p81 = scmp.ne.s32.totalorder %s72, %s73
    %p82 = scmp.eq.s32.totalorder %s20, 0
    %p83 = por %p81, %p82
    %p84 = scmp.ne.s32.totalorder %s72, %s73
    %p85 = scmp.eq.s32.totalorder %s21, 2
    %p86 = por %p84, %p85
    %p88 = scmp.ne.s32.totalorder %s73, %s87
    %p89 = scmp.eq.s32.totalorder %s21, 0
    %p90 = por %p88, %p89
    %s92 = sadd.s32 %s91, 1
    %p95 = scmp.eq.s32.totalorder %s15, 2
    %p96 = scmp.ne.s32.totalorder %s91, %s93
    %p97 = scmp.eq.s32.totalorder %s15, 0
    %p98 = por %p96, %p97
    %p99 = scmp.ne.s32.totalorder %s91, %s93
    %p100 = scmp.eq.s32.totalorder %s20, 2
    %p101 = por %p99, %p100
    %p102 = scmp.ne.s32.totalorder %s93, %s94
    %p103 = scmp.eq.s32.totalorder %s20, 0
    %p104 = por %p102, %p103
    %p105 = scmp.ne.s32.totalorder %s93, %s94
    %p106 = scmp.eq.s32.totalorder %s21, 2
    %p107 = por %p105, %p106
    %p109 = scmp.ne.s32.totalorder %s94, %s108
    %p110 = scmp.eq.s32.totalorder %s21, 0
    %p111 = por %p109, %p110
    %s113 = sadd.s32 %s112, 1
    %p116 = scmp.eq.s32.totalorder %s15, 2
    %p117 = scmp.ne.s32.totalorder %s112, %s114
    %p118 = scmp.eq.s32.totalorder %s15, 0
    %p119 = por %p117, %p118
    %p120 = scmp.ne.s32.totalorder %s112, %s114
    %p121 = scmp.eq.s32.totalorder %s20, 2
    %p122 = por %p120, %p121
    %p123 = scmp.ne.s32.totalorder %s114, %s115
    %p124 = scmp.eq.s32.totalorder %s20, 0
    %p125 = por %p123, %p124
    %p126 = scmp.ne.s32.totalorder %s114, %s115
    %p127 = scmp.eq.s32.totalorder %s21, 2
    %p128 = por %p126, %p127
    %p130 = scmp.ne.s32.totalorder %s115, %s129
    %p131 = scmp.eq.s32.totalorder %s21, 0
    %p132 = por %p130, %p131
    %s134 = sadd.s32 %s133, 1
    %p137 = scmp.eq.s32.totalorder %s15, 2
    %p138 = scmp.ne.s32.totalorder %s133, %s135
    %p139 = scmp.eq.s32.totalorder %s15, 0
    %p140 = por %p138, %p139
    %p141 = scmp.ne.s32.totalorder %s133, %s135
    %p142 = scmp.eq.s32.totalorder %s20, 2
    %p143 = por %p141, %p142
    %p144 = scmp.ne.s32.totalorder %s135, %s136
    %p145 = scmp.eq.s32.totalorder %s20, 0
    %p146 = por %p144, %p145
    %p147 = scmp.ne.s32.totalorder %s135, %s136
    %p148 = scmp.eq.s32.totalorder %s21, 2
    %p149 = por %p147, %p148
    %p151 = scmp.ne.s32.totalorder %s136, %s150
    %p152 = scmp.eq.s32.totalorder %s21, 0
    %p153 = por %p151, %p152
    %s155 = sadd.s32 %s154, 1
    %p158 = scmp.eq.s32.totalorder %s15, 2
    %p159 = scmp.ne.s32.totalorder %s154, %s156
    %p160 = scmp.eq.s32.totalorder %s15, 0
    %p161 = por %p159, %p160
    %p162 = scmp.ne.s32.totalorder %s154, %s156
    %p163 = scmp.eq.s32.totalorder %s20, 2
    %p164 = por %p162, %p163
    %p165 = scmp.ne.s32.totalorder %s156, %s157
    %p166 = scmp.eq.s32.totalorder %s20, 0
    %p167 = por %p165, %p166
    %p168 = scmp.ne.s32.totalorder %s156, %s157
    %p169 = scmp.eq.s32.totalorder %s21, 2
    %p170 = por %p168, %p169
    %p172 = scmp.ne.s32.totalorder %s157, %s171
    %p173 = scmp.eq.s32.totalorder %s21, 0
    %p174 = por %p172, %p173
    %s176 = sadd.s32 %s175, 1
    %p179 = scmp.eq.s32.totalorder %s15, 2
    %p180 = scmp.ne.s32.totalorder %s175, %s177
    %p181 = scmp.eq.s32.totalorder %s15, 0
    %p182 = por %p180, %p181
    %p183 = scmp.ne.s32.totalorder %s175, %s177
    %p184 = scmp.eq.s32.totalorder %s20, 2
    %p185 = por %p183, %p184
    %p186 = scmp.ne.s32.totalorder %s177, %s178
    %p187 = scmp.eq.s32.totalorder %s20, 0
    %p188 = por %p186, %p187
    %p189 = scmp.ne.s32.totalorder %s177, %s178
    %p190 = scmp.eq.s32.totalorder %s21, 2
    %p191 = por %p189, %p190
    %p193 = scmp.ne.s32.totalorder %s178, %s192
    %p194 = scmp.eq.s32.totalorder %s21, 0
    %p195 = por %p193, %p194
    %s197 = sadd.s32 %s196, 1
    %p200 = scmp.eq.s32.totalorder %s15, 2
    %p201 = scmp.ne.s32.totalorder %s196, %s198
    %p202 = scmp.eq.s32.totalorder %s15, 0
    %p203 = por %p201, %p202
    %p204 = scmp.ne.s32.totalorder %s196, %s198
    %p205 = scmp.eq.s32.totalorder %s20, 2
    %p206 = por %p204, %p205
    %p207 = scmp.ne.s32.totalorder %s198, %s199
    %p208 = scmp.eq.s32.totalorder %s20, 0
    %p209 = por %p207, %p208
    %p210 = scmp.ne.s32.totalorder %s198, %s199
    %p211 = scmp.eq.s32.totalorder %s21, 2
    %p212 = por %p210, %p211
    %p214 = scmp.ne.s32.totalorder %s199, %s213
    %p215 = scmp.eq.s32.totalorder %s21, 0
    %p216 = por %p214, %p215
    %s217 = ssub.s32 %s15, %s22
    %p218 = scmp.eq.s32.totalorder %s217, 0
    %s220 = sadd.s32 %s219, 1
    %s221 = scalar_select %p218, %s219, %s220
    %p224 = pneg %p218
    %p225 = scmp.eq.s32.totalorder %s15, 2
    %p226 = por %p224, %p225
    %p227 = scmp.ne.s32.totalorder %s219, %s222
    %p228 = scmp.eq.s32.totalorder %s15, 0
    %p229 = por %p227, %p228
    %p230 = scmp.ne.s32.totalorder %s219, %s222
    %p231 = scmp.eq.s32.totalorder %s20, 2
    %p232 = por %p230, %p231
    %p233 = scmp.ne.s32.totalorder %s222, %s223
    %p234 = scmp.eq.s32.totalorder %s20, 0
    %p235 = por %p233, %p234
    %p236 = scmp.ne.s32.totalorder %s222, %s223
    %p237 = scmp.eq.s32.totalorder %s21, 2
    %p238 = por %p236, %p237
    %p240 = scmp.ne.s32.totalorder %s223, %s239
    %p241 = scmp.eq.s32.totalorder %s21, 0
    %p242 = por %p240, %p241
    %p243 = scmp.le.s32.totalorder 1, %s15
    %p244 = scmp.lt.s32.totalorder %s15, 4
    %p245 = pnand %p243, %p244
    %p246 = pneg %p245
    // Predicated region
    $region9: #{pinn_forward.1} parent=5 // pred_check
      _
    $region10: #{pinn_forward.1} parent=5 // pred_check_branch
      %248 = sbr.rel (%p245) target = $region12
    $region11: #{pinn_forward.1} parent=5 // pred_region
      %s249 = ssub.s32 %s15, 1
      // Predicated region
      $region13: #{pinn_forward.1} parent=11 // pred_check
        %p250 = pneg %p62
      $region14: #{pinn_forward.1} parent=11 // pred_check_branch
        %252 = sbr.rel (%p250) target = $region16
      $region15: #{pinn_forward.1} parent=11 // pred_region
        _
      $region16: #{pinn_forward.1} parent=11 // pred_fallthru
        _
      // Predicated region
      $region17: #{pinn_forward.1} parent=11 // pred_check
        %p253 = pneg %p83
      $region18: #{pinn_forward.1} parent=11 // pred_check_branch
        %255 = sbr.rel (%p253) target = $region20
      $region19: #{pinn_forward.1} parent=11 // pred_region
        _
      $region20: #{pinn_forward.1} parent=11 // pred_fallthru
        _
      // Predicated region
      $region21: #{pinn_forward.1} parent=11 // pred_check
        %p256 = pneg %p104
      $region22: #{pinn_forward.1} parent=11 // pred_check_branch
        %258 = sbr.rel (%p256) target = $region24
      $region23: #{pinn_forward.1} parent=11 // pred_region
        _
      $region24: #{pinn_forward.1} parent=11 // pred_fallthru
        _
      // Predicated region
      $region25: #{pinn_forward.1} parent=11 // pred_check
        %p259 = pneg %p125
      $region26: #{pinn_forward.1} parent=11 // pred_check_branch
        %261 = sbr.rel (%p259) target = $region28
      $region27: #{pinn_forward.1} parent=11 // pred_region
        _
      $region28: #{pinn_forward.1} parent=11 // pred_fallthru
        _
      // Predicated region
      $region29: #{pinn_forward.1} parent=11 // pred_check
        %p262 = pneg %p146
      $region30: #{pinn_forward.1} parent=11 // pred_check_branch
        %264 = sbr.rel (%p262) target = $region32
      $region31: #{pinn_forward.1} parent=11 // pred_region
        _
      $region32: #{pinn_forward.1} parent=11 // pred_fallthru
        _
      // Predicated region
      $region33: #{pinn_forward.1} parent=11 // pred_check
        %p265 = pneg %p167
      $region34: #{pinn_forward.1} parent=11 // pred_check_branch
        %267 = sbr.rel (%p265) target = $region36
      $region35: #{pinn_forward.1} parent=11 // pred_region
        _
      $region36: #{pinn_forward.1} parent=11 // pred_fallthru
        _
      // Predicated region
      $region37: #{pinn_forward.1} parent=11 // pred_check
        %p268 = pneg %p188
      $region38: #{pinn_forward.1} parent=11 // pred_check_branch
        %270 = sbr.rel (%p268) target = $region40
      $region39: #{pinn_forward.1} parent=11 // pred_region
        _
      $region40: #{pinn_forward.1} parent=11 // pred_fallthru
        _
      // Predicated region
      $region41: #{pinn_forward.1} parent=11 // pred_check
        %p271 = pneg %p209
      $region42: #{pinn_forward.1} parent=11 // pred_check_branch
        %273 = sbr.rel (%p271) target = $region44
      $region43: #{pinn_forward.1} parent=11 // pred_region
        _
      $region44: #{pinn_forward.1} parent=11 // pred_fallthru
        _
    $region12: #{pinn_forward.1} parent=5 // pred_fallthru
      _
    %p274 = scmp.lt.s32.totalorder %s15, 3
    // Predicated region
    $region45: #{pinn_forward.1} parent=5 // pred_check
      %p275 = pneg %p274
    $region46: #{pinn_forward.1} parent=5 // pred_check_branch
      %277 = sbr.rel (%p275) target = $region48
    $region47: #{pinn_forward.1} parent=5 // pred_region
      // Predicated region
      $region49: #{pinn_forward.1} parent=47 // pred_check
        %p278 = pneg %p35
      $region50: #{pinn_forward.1} parent=47 // pred_check_branch
        %280 = sbr.rel (%p278) target = $region52
      $region51: #{pinn_forward.1} parent=47 // pred_region
        %p281 = scmp.lt.s32.totalorder %s15, 2
        %s282 = scalar_select %p281, %s15, 2
        %s283 = smul.addr %s282, 2
        %s284 = scalar_lea.vmem %s0, %s283
      $region52: #{pinn_forward.1} parent=47 // pred_fallthru
        _
    $region48: #{pinn_forward.1} parent=5 // pred_fallthru
      _
    %p285 = scmp.le.s32.totalorder 1, %s15
    %p286 = scmp.lt.s32.totalorder %s15, 4
    %p287 = pnand %p285, %p286
    %p288 = pneg %p287
    // Predicated region
    $region53: #{pinn_forward.1} parent=5 // pred_check
      _
    $region54: #{pinn_forward.1} parent=5 // pred_check_branch
      %290 = sbr.rel (%p287) target = $region56
    $region55: #{pinn_forward.1} parent=5 // pred_region
      %s291 = ssub.s32 %s15, 1
      %p292 = scmp.lt.s32.totalorder %s20, 2
      %s293 = scalar_select %p292, %s20, 2
      %s294 = smul.addr %s293, 2
      %s295 = scalar_lea.vmem %s0, %s294
      %p296 = pneg %p41
      %p297 = pneg %p38
      %p298 = pneg %p62
      %p299 = pneg %p59
      %p300 = pneg %p83
      %p301 = pneg %p80
      %p302 = pneg %p104
      %p303 = pneg %p101
      %p304 = pneg %p125
      %p305 = pneg %p122
      %p306 = pneg %p146
      %p307 = pneg %p143
      %p308 = pneg %p167
      %p309 = pneg %p164
      %p310 = pneg %p188
      %p311 = pneg %p185
      %p312 = pneg %p209
      %p313 = pneg %p206
      %p314 = pneg %p235
      %p315 = pneg %p232
      %p316 = scmp.lt.s32.totalorder %s20, 2
      %s317 = scalar_select %p316, %s20, 2
      %s318 = smul.addr %s317, 2
      %s319 = scalar_lea.vmem %s9, %s318
      %p320 = scmp.lt.s32.totalorder %s20, 2
      %s321 = scalar_select %p320, %s20, 2
      %s322 = smul.addr %s321, 2
      %s323 = scalar_lea.vmem %s0, %s322
      %p324 = scmp.lt.s32.totalorder %s20, 2
      %s325 = scalar_select %p324, %s20, 2
      %s326 = smul.addr %s325, 2
      %s327 = scalar_lea.vmem %s9, %s326
      %v328 = vld [vmem:[%s323] sm:$0x3]
      %v329 = vld [vmem:[%s1] sm:$0xff]
      %v330 = vld [vmem:[%s1 + $0x8] sm:$0xff]
      %v331 = vld [vmem:[%s1 + $0x10] sm:$0xff]
      %v332 = vld [vmem:[%s1 + $0x18] sm:$0xff]
      %v333 = vld [vmem:[%s5] sm:$0xff]
      %v334 = vld [vmem:[%s5 + $0x8] sm:$0xff]
      %v335 = vld [vmem:[%s5 + $0x10] sm:$0xff]
      %v336 = vld [vmem:[%s5 + $0x18] sm:$0xff]
      %338 = vset.pattern.permute.xlu0 0
      %339 = vperm.xlu0 %338, %v333
      %v340 = vpop.permute.xlu0 %339
      %343 = vset.pattern.permute.xlu0 0
      %344 = vperm.xlu0 %343, %v334
      %v345 = vpop.permute.xlu0 %344
      %348 = vset.pattern.permute.xlu0 0
      %349 = vperm.xlu0 %348, %v335
      %v350 = vpop.permute.xlu0 %349
      %353 = vset.pattern.permute.xlu0 0
      %354 = vperm.xlu0 %353, %v336
      %v355 = vpop.permute.xlu0 %354
      %vm357 = vcmask 15360
      %v359 = vsel %vm357, %v329, 0
      %v362 = vsel %vm357, %v330, 0
      %v365 = vsel %vm357, %v331, 0
      %v368 = vsel %vm357, %v332, 0
      %vm370 = vcmask 1041408
      %v372 = vsel %vm370, %v328, 0
      %374 = vmatprep.subr.mxu0 0.0
      %375 = vmatpush1.msra.mxu0 0.0
      %376 = vmatprep.subr.mxu0 0.0
      %377 = vmatpush1.msra.mxu0 0.0
      %378 = vmatprep.subr.mxu0 0.0
      %379 = vmatpush1.msra.mxu0 0.0
      %380 = vmatprep.subr.mxu0 0.0
      %381 = vmatpush1.msra.mxu0 0.0
      %382 = vmatprep.subr.mxu0 0.0
      %383 = vmatpush1.msra.mxu0 0.0
      %384 = vmatprep.subr.mxu0 0.0
      %385 = vmatpush1.msra.mxu0 0.0
      %386 = vmatprep.subr.mxu0 0.0
      %387 = vmatpush1.msra.mxu0 0.0
      %388 = vmatprep.subr.mxu0 0.0
      %389 = vmatpush1.msra.mxu0 0.0
      %390 = vmatprep.subr.mxu0 0.0
      %391 = vmatpush1.msra.mxu0 0.0
      %392 = vmatprep.subr.mxu0 0.0
      %393 = vmatpush1.msra.mxu0 0.0
      %394 = vmatprep.subr.mxu0 0.0
      %395 = vmatpush1.msra.mxu0 0.0
      %396 = vmatprep.subr.mxu0 0.0
      %397 = vmatpush1.msra.mxu0 0.0
      %398 = vmatprep.subr.mxu0 0.0
      %399 = vmatpush1.msra.mxu0 0.0
      %400 = vmatprep.subr.mxu0 0.0
      %401 = vmatpush1.msra.mxu0 0.0
      %402 = vmatprep.subr.mxu0 0.0
      %403 = vmatpush1.msra.mxu0 0.0
      %404 = vmatprep.subr.mxu0 0.0
      %405 = vmatpush1.msra.mxu0 %v372
      %406 = vmatprep.subr.mxu0 0.0
      %407 = vmatpush2.msra.mxu0 0.0
      %408 = vmatprep.subr.mxu0 0.0
      %409 = vmatpush2.msra.mxu0 0.0
      %410 = vmatprep.subr.mxu0 0.0
      %411 = vmatpush2.msra.mxu0 0.0
      %412 = vmatprep.subr.mxu0 0.0
      %413 = vmatpush2.msra.mxu0 0.0
      %414 = vmatprep.subr.mxu0 0.0
      %415 = vmatpush2.msra.mxu0 0.0
      %416 = vmatprep.subr.mxu0 0.0
      %417 = vmatpush2.msra.mxu0 0.0
      %418 = vmatprep.subr.mxu0 0.0
      %419 = vmatpush2.msra.mxu0 0.0
      %420 = vmatprep.subr.mxu0 0.0
      %421 = vmatpush2.msra.mxu0 0.0
      %422 = vmatprep.subr.mxu0 0.0
      %423 = vmatpush2.msra.mxu0 0.0
      %424 = vmatprep.subr.mxu0 0.0
      %425 = vmatpush2.msra.mxu0 0.0
      %426 = vmatprep.subr.mxu0 0.0
      %427 = vmatpush2.msra.mxu0 0.0
      %428 = vmatprep.subr.mxu0 0.0
      %429 = vmatpush2.msra.mxu0 0.0
      %430 = vmatprep.subr.mxu0 0.0
      %431 = vmatpush2.msra.mxu0 0.0
      %432 = vmatprep.subr.mxu0 0.0
      %433 = vmatpush2.msra.mxu0 0.0
      %434 = vmatprep.subr.mxu0 0.0
      %435 = vmatpush2.msra.mxu0 0.0
      %436 = vmatprep.subr.mxu0 0.0
      %437 = vmatpush2.msra.mxu0 0.0
      %438 = vmatprep.mubr.f32.mxu0 0.0
      %439 = vmatmul.mubr.f32.gmra.mxu0 %v359
      %v440 = vpop.f32.mrf.mxu0
      %v441 = vadd.f32 %v340, %v440
      %v442 = vpop.f32.mrf.mxu0
      %443 = vmatprep.mubr.f32.mxu0 0.0
      %444 = vmatmul.mubr.f32.gmra.mxu0 %v362
      %v445 = vpop.f32.mrf.mxu0
      %v446 = vadd.f32 %v345, %v445
      %v447 = vpop.f32.mrf.mxu0
      %448 = vmatprep.mubr.f32.mxu0 0.0
      %449 = vmatmul.mubr.f32.gmra.mxu0 %v365
      %v450 = vpop.f32.mrf.mxu0
      %v451 = vadd.f32 %v350, %v450
      %v452 = vpop.f32.mrf.mxu0
      %453 = vmatprep.mubr.f32.mxu0 0.0
      %454 = vmatmul.mubr.f32.gmra.mxu0 %v368
      %v455 = vpop.f32.mrf.mxu0
      %v456 = vadd.f32 %v355, %v455
      %v457 = vpop.f32.mrf.mxu0
      %458 = vdwg.mxu0
      %v459 = vtanh.pop %v441
      %v460 = vtanh.pop %v446
      %v461 = vtanh.pop %v451
      %v462 = vtanh.pop %v456
      %v463 = vld [vmem:[%s2] sm:$0xff]
      %v464 = vld [vmem:[%s2 + $0x8] sm:$0xff]
      %v465 = vld [vmem:[%s2 + $0x10] sm:$0xff]
      %v466 = vld [vmem:[%s2 + $0x18] sm:$0xff]
      %v467 = vld [vmem:[%s6] sm:$0xff]
      %v468 = vld [vmem:[%s6 + $0x8] sm:$0xff]
      %v469 = vld [vmem:[%s6 + $0x10] sm:$0xff]
      %v470 = vld [vmem:[%s6 + $0x18] sm:$0xff]
      %472 = vset.pattern.permute.xlu0 0
      %473 = vperm.xlu0 %472, %v467
      %v474 = vpop.permute.xlu0 %473
      %477 = vset.pattern.permute.xlu0 0
      %478 = vperm.xlu0 %477, %v468
      %v479 = vpop.permute.xlu0 %478
      %482 = vset.pattern.permute.xlu0 0
      %483 = vperm.xlu0 %482, %v469
      %v484 = vpop.permute.xlu0 %483
      %487 = vset.pattern.permute.xlu0 0
      %488 = vperm.xlu0 %487, %v470
      %v489 = vpop.permute.xlu0 %488
      %vm491 = vcmask 261120
      %v493 = vsel %vm491, %v463, 0
      %v496 = vsel %vm491, %v464, 0
      %v499 = vsel %vm491, %v465, 0
      %v502 = vsel %vm491, %v466, 0
      %504 = vmatprep.subr.mxu0 0.0
      %505 = vmatpush1.msra.mxu0 0.0
      %506 = vmatprep.subr.mxu0 0.0
      %507 = vmatpush1.msra.mxu0 0.0
      %508 = vmatprep.subr.mxu0 0.0
      %509 = vmatpush1.msra.mxu0 0.0
      %510 = vmatprep.subr.mxu0 0.0
      %511 = vmatpush1.msra.mxu0 0.0
      %512 = vmatprep.subr.mxu0 0.0
      %513 = vmatpush1.msra.mxu0 0.0
      %514 = vmatprep.subr.mxu0 0.0
      %515 = vmatpush1.msra.mxu0 0.0
      %516 = vmatprep.subr.mxu0 0.0
      %517 = vmatpush1.msra.mxu0 0.0
      %518 = vmatprep.subr.mxu0 0.0
      %519 = vmatpush1.msra.mxu0 0.0
      %520 = vmatprep.subr.mxu0 0.0
      %521 = vmatpush1.msra.mxu0 0.0
      %522 = vmatprep.subr.mxu0 0.0
      %523 = vmatpush1.msra.mxu0 0.0
      %524 = vmatprep.subr.mxu0 0.0
      %525 = vmatpush1.msra.mxu0 0.0
      %526 = vmatprep.subr.mxu0 0.0
      %527 = vmatpush1.msra.mxu0 0.0
      %528 = vmatprep.subr.mxu0 0.0
      %529 = vmatpush1.msra.mxu0 %v462
      %530 = vmatprep.subr.mxu0 0.0
      %531 = vmatpush1.msra.mxu0 %v461
      %532 = vmatprep.subr.mxu0 0.0
      %533 = vmatpush1.msra.mxu0 %v460
      %534 = vmatprep.subr.mxu0 0.0
      %535 = vmatpush1.msra.mxu0 %v459
      %536 = vmatprep.subr.mxu0 0.0
      %537 = vmatpush2.msra.mxu0 0.0
      %538 = vmatprep.subr.mxu0 0.0
      %539 = vmatpush2.msra.mxu0 0.0
      %540 = vmatprep.subr.mxu0 0.0
      %541 = vmatpush2.msra.mxu0 0.0
      %542 = vmatprep.subr.mxu0 0.0
      %543 = vmatpush2.msra.mxu0 0.0
      %544 = vmatprep.subr.mxu0 0.0
      %545 = vmatpush2.msra.mxu0 0.0
      %546 = vmatprep.subr.mxu0 0.0
      %547 = vmatpush2.msra.mxu0 0.0
      %548 = vmatprep.subr.mxu0 0.0
      %549 = vmatpush2.msra.mxu0 0.0
      %550 = vmatprep.subr.mxu0 0.0
      %551 = vmatpush2.msra.mxu0 0.0
      %552 = vmatprep.subr.mxu0 0.0
      %553 = vmatpush2.msra.mxu0 0.0
      %554 = vmatprep.subr.mxu0 0.0
      %555 = vmatpush2.msra.mxu0 0.0
      %556 = vmatprep.subr.mxu0 0.0
      %557 = vmatpush2.msra.mxu0 0.0
      %558 = vmatprep.subr.mxu0 0.0
      %559 = vmatpush2.msra.mxu0 0.0
      %560 = vmatprep.subr.mxu0 0.0
      %561 = vmatpush2.msra.mxu0 0.0
      %562 = vmatprep.subr.mxu0 0.0
      %563 = vmatpush2.msra.mxu0 0.0
      %564 = vmatprep.subr.mxu0 0.0
      %565 = vmatpush2.msra.mxu0 0.0
      %566 = vmatprep.subr.mxu0 0.0
      %567 = vmatpush2.msra.mxu0 0.0
      %568 = vmatprep.mubr.f32.mxu0 0.0
      %569 = vmatmul.mubr.f32.gmra.mxu0 %v493
      %v570 = vpop.f32.mrf.mxu0
      %v571 = vadd.f32 %v474, %v570
      %v572 = vpop.f32.mrf.mxu0
      %573 = vmatprep.mubr.f32.mxu0 0.0
      %574 = vmatmul.mubr.f32.gmra.mxu0 %v496
      %v575 = vpop.f32.mrf.mxu0
      %v576 = vadd.f32 %v479, %v575
      %v577 = vpop.f32.mrf.mxu0
      %578 = vmatprep.mubr.f32.mxu0 0.0
      %579 = vmatmul.mubr.f32.gmra.mxu0 %v499
      %v580 = vpop.f32.mrf.mxu0
      %v581 = vadd.f32 %v484, %v580
      %v582 = vpop.f32.mrf.mxu0
      %583 = vmatprep.mubr.f32.mxu0 0.0
      %584 = vmatmul.mubr.f32.gmra.mxu0 %v502
      %v585 = vpop.f32.mrf.mxu0
      %v586 = vadd.f32 %v489, %v585
      %v587 = vpop.f32.mrf.mxu0
      %588 = vdwg.mxu0
      %v589 = vtanh.pop %v571
      %v590 = vtanh.pop %v576
      %v591 = vtanh.pop %v581
      %v592 = vtanh.pop %v586
      %v593 = vld [vmem:[%s3] sm:$0xff]
      %v594 = vld [vmem:[%s3 + $0x8] sm:$0xff]
      %v595 = vld [vmem:[%s3 + $0x10] sm:$0xff]
      %v596 = vld [vmem:[%s3 + $0x18] sm:$0xff]
      %v597 = vld [vmem:[%s7] sm:$0xff]
      %v598 = vld [vmem:[%s7 + $0x8] sm:$0xff]
      %v599 = vld [vmem:[%s7 + $0x10] sm:$0xff]
      %v600 = vld [vmem:[%s7 + $0x18] sm:$0xff]
      %602 = vset.pattern.permute.xlu0 0
      %603 = vperm.xlu0 %602, %v597
      %v604 = vpop.permute.xlu0 %603
      %607 = vset.pattern.permute.xlu0 0
      %608 = vperm.xlu0 %607, %v598
      %v609 = vpop.permute.xlu0 %608
      %612 = vset.pattern.permute.xlu0 0
      %613 = vperm.xlu0 %612, %v599
      %v614 = vpop.permute.xlu0 %613
      %617 = vset.pattern.permute.xlu0 0
      %618 = vperm.xlu0 %617, %v600
      %v619 = vpop.permute.xlu0 %618
      %v622 = vsel %vm491, %v593, 0
      %v625 = vsel %vm491, %v594, 0
      %v628 = vsel %vm491, %v595, 0
      %v631 = vsel %vm491, %v596, 0
      %633 = vmatprep.subr.mxu0 0.0
      %634 = vmatpush1.msra.mxu0 0.0
      %635 = vmatprep.subr.mxu0 0.0
      %636 = vmatpush1.msra.mxu0 0.0
      %637 = vmatprep.subr.mxu0 0.0
      %638 = vmatpush1.msra.mxu0 0.0
      %639 = vmatprep.subr.mxu0 0.0
      %640 = vmatpush1.msra.mxu0 0.0
      %641 = vmatprep.subr.mxu0 0.0
      %642 = vmatpush1.msra.mxu0 0.0
      %643 = vmatprep.subr.mxu0 0.0
      %644 = vmatpush1.msra.mxu0 0.0
      %645 = vmatprep.subr.mxu0 0.0
      %646 = vmatpush1.msra.mxu0 0.0
      %647 = vmatprep.subr.mxu0 0.0
      %648 = vmatpush1.msra.mxu0 0.0
      %649 = vmatprep.subr.mxu0 0.0
      %650 = vmatpush1.msra.mxu0 0.0
      %651 = vmatprep.subr.mxu0 0.0
      %652 = vmatpush1.msra.mxu0 0.0
      %653 = vmatprep.subr.mxu0 0.0
      %654 = vmatpush1.msra.mxu0 0.0
      %655 = vmatprep.subr.mxu0 0.0
      %656 = vmatpush1.msra.mxu0 0.0
      %657 = vmatprep.subr.mxu0 0.0
      %658 = vmatpush1.msra.mxu0 %v592
      %659 = vmatprep.subr.mxu0 0.0
      %660 = vmatpush1.msra.mxu0 %v591
      %661 = vmatprep.subr.mxu0 0.0
      %662 = vmatpush1.msra.mxu0 %v590
      %663 = vmatprep.subr.mxu0 0.0
      %664 = vmatpush1.msra.mxu0 %v589
      %665 = vmatprep.subr.mxu0 0.0
      %666 = vmatpush2.msra.mxu0 0.0
      %667 = vmatprep.subr.mxu0 0.0
      %668 = vmatpush2.msra.mxu0 0.0
      %669 = vmatprep.subr.mxu0 0.0
      %670 = vmatpush2.msra.mxu0 0.0
      %671 = vmatprep.subr.mxu0 0.0
      %672 = vmatpush2.msra.mxu0 0.0
      %673 = vmatprep.subr.mxu0 0.0
      %674 = vmatpush2.msra.mxu0 0.0
      %675 = vmatprep.subr.mxu0 0.0
      %676 = vmatpush2.msra.mxu0 0.0
      %677 = vmatprep.subr.mxu0 0.0
      %678 = vmatpush2.msra.mxu0 0.0
      %679 = vmatprep.subr.mxu0 0.0
      %680 = vmatpush2.msra.mxu0 0.0
      %681 = vmatprep.subr.mxu0 0.0
      %682 = vmatpush2.msra.mxu0 0.0
      %683 = vmatprep.subr.mxu0 0.0
      %684 = vmatpush2.msra.mxu0 0.0
      %685 = vmatprep.subr.mxu0 0.0
      %686 = vmatpush2.msra.mxu0 0.0
      %687 = vmatprep.subr.mxu0 0.0
      %688 = vmatpush2.msra.mxu0 0.0
      %689 = vmatprep.subr.mxu0 0.0
      %690 = vmatpush2.msra.mxu0 0.0
      %691 = vmatprep.subr.mxu0 0.0
      %692 = vmatpush2.msra.mxu0 0.0
      %693 = vmatprep.subr.mxu0 0.0
      %694 = vmatpush2.msra.mxu0 0.0
      %695 = vmatprep.subr.mxu0 0.0
      %696 = vmatpush2.msra.mxu0 0.0
      %697 = vmatprep.mubr.f32.mxu0 0.0
      %698 = vmatmul.mubr.f32.gmra.mxu0 %v622
      %v699 = vpop.f32.mrf.mxu0
      %v700 = vadd.f32 %v604, %v699
      %v701 = vpop.f32.mrf.mxu0
      %702 = vmatprep.mubr.f32.mxu0 0.0
      %703 = vmatmul.mubr.f32.gmra.mxu0 %v625
      %v704 = vpop.f32.mrf.mxu0
      %v705 = vadd.f32 %v609, %v704
      %v706 = vpop.f32.mrf.mxu0
      %707 = vmatprep.mubr.f32.mxu0 0.0
      %708 = vmatmul.mubr.f32.gmra.mxu0 %v628
      %v709 = vpop.f32.mrf.mxu0
      %v710 = vadd.f32 %v614, %v709
      %v711 = vpop.f32.mrf.mxu0
      %712 = vmatprep.mubr.f32.mxu0 0.0
      %713 = vmatmul.mubr.f32.gmra.mxu0 %v631
      %v714 = vpop.f32.mrf.mxu0
      %v715 = vadd.f32 %v619, %v714
      %v716 = vpop.f32.mrf.mxu0
      %717 = vdwg.mxu0
      %v718 = vtanh.pop %v700
      %v719 = vtanh.pop %v705
      %v720 = vtanh.pop %v710
      %v721 = vtanh.pop %v715
      %v722 = vld [vmem:[%s4] sm:$0x3]
      %v723 = vld [vmem:[%s8] sm:$0x3]
      %725 = vset.pattern.permute.xlu0 0
      %726 = vperm.xlu0 %725, %v723
      %v727 = vpop.permute.xlu0 %726
      %v730 = vsel %vm491, %v722, 0
      %732 = vmatprep.subr.mxu0 0.0
      %733 = vmatpush1.msra.mxu0 0.0
      %734 = vmatprep.subr.mxu0 0.0
      %735 = vmatpush1.msra.mxu0 0.0
      %736 = vmatprep.subr.mxu0 0.0
      %737 = vmatpush1.msra.mxu0 0.0
      %738 = vmatprep.subr.mxu0 0.0
      %739 = vmatpush1.msra.mxu0 0.0
      %740 = vmatprep.subr.mxu0 0.0
      %741 = vmatpush1.msra.mxu0 0.0
      %742 = vmatprep.subr.mxu0 0.0
      %743 = vmatpush1.msra.mxu0 0.0
      %744 = vmatprep.subr.mxu0 0.0
      %745 = vmatpush1.msra.mxu0 0.0
      %746 = vmatprep.subr.mxu0 0.0
      %747 = vmatpush1.msra.mxu0 0.0
      %748 = vmatprep.subr.mxu0 0.0
      %749 = vmatpush1.msra.mxu0 0.0
      %750 = vmatprep.subr.mxu0 0.0
      %751 = vmatpush1.msra.mxu0 0.0
      %752 = vmatprep.subr.mxu0 0.0
      %753 = vmatpush1.msra.mxu0 0.0
      %754 = vmatprep.subr.mxu0 0.0
      %755 = vmatpush1.msra.mxu0 0.0
      %756 = vmatprep.subr.mxu0 0.0
      %757 = vmatpush1.msra.mxu0 %v721
      %758 = vmatprep.subr.mxu0 0.0
      %759 = vmatpush1.msra.mxu0 %v720
      %760 = vmatprep.subr.mxu0 0.0
      %761 = vmatpush1.msra.mxu0 %v719
      %762 = vmatprep.subr.mxu0 0.0
      %763 = vmatpush1.msra.mxu0 %v718
      %764 = vmatprep.subr.mxu0 0.0
      %765 = vmatpush2.msra.mxu0 0.0
      %766 = vmatprep.subr.mxu0 0.0
      %767 = vmatpush2.msra.mxu0 0.0
      %768 = vmatprep.subr.mxu0 0.0
      %769 = vmatpush2.msra.mxu0 0.0
      %770 = vmatprep.subr.mxu0 0.0
      %771 = vmatpush2.msra.mxu0 0.0
      %772 = vmatprep.subr.mxu0 0.0
      %773 = vmatpush2.msra.mxu0 0.0
      %774 = vmatprep.subr.mxu0 0.0
      %775 = vmatpush2.msra.mxu0 0.0
      %776 = vmatprep.subr.mxu0 0.0
      %777 = vmatpush2.msra.mxu0 0.0
      %778 = vmatprep.subr.mxu0 0.0
      %779 = vmatpush2.msra.mxu0 0.0
      %780 = vmatprep.subr.mxu0 0.0
      %781 = vmatpush2.msra.mxu0 0.0
      %782 = vmatprep.subr.mxu0 0.0
      %783 = vmatpush2.msra.mxu0 0.0
      %784 = vmatprep.subr.mxu0 0.0
      %785 = vmatpush2.msra.mxu0 0.0
      %786 = vmatprep.subr.mxu0 0.0
      %787 = vmatpush2.msra.mxu0 0.0
      %788 = vmatprep.subr.mxu0 0.0
      %789 = vmatpush2.msra.mxu0 0.0
      %790 = vmatprep.subr.mxu0 0.0
      %791 = vmatpush2.msra.mxu0 0.0
      %792 = vmatprep.subr.mxu0 0.0
      %793 = vmatpush2.msra.mxu0 0.0
      %794 = vmatprep.subr.mxu0 0.0
      %795 = vmatpush2.msra.mxu0 0.0
      %796 = vmatprep.mubr.f32.mxu0 0.0
      %797 = vmatmul.mubr.f32.gmra.mxu0 %v730
      %v798 = vpop.f32.mrf.mxu0
      %v799 = vadd.f32 %v727, %v798
      %v800 = vpop.f32.mrf.mxu0
      %801 = vdwg.mxu0
      %802 = vst [vmem:[%s327] sm:$0x3] %v799
      %p803 = scmp.lt.s32.totalorder %s20, 2
      %s804 = scalar_select %p803, %s20, 2
      %s805 = smul.addr %s804, 2
      %s806 = scalar_lea.vmem %s9, %s805
      // Predicated region
      $region57: #{pinn_forward.1} parent=55 // pred_check
        %p807 = pneg %p232
      $region58: #{pinn_forward.1} parent=55 // pred_check_branch
        %809 = sbr.rel (%p807) target = $region60
      $region59: #{pinn_forward.1} parent=55 // pred_region
        _
      $region60: #{pinn_forward.1} parent=55 // pred_fallthru
        _
    $region56: #{pinn_forward.1} parent=5 // pred_fallthru
      _
    %p810 = scmp.le.s32.totalorder 2, %s15
    // Predicated region
    $region61: #{pinn_forward.1} parent=5 // pred_check
      %p811 = pneg %p810
    $region62: #{pinn_forward.1} parent=5 // pred_check_branch
      %813 = sbr.rel (%p811) target = $region64
    $region63: #{pinn_forward.1} parent=5 // pred_region
      %s814 = ssub.s32 %s15, 2
      // Predicated region
      $region65: #{pinn_forward.1} parent=63 // pred_check
        %p815 = pneg %p238
      $region66: #{pinn_forward.1} parent=63 // pred_check_branch
        %817 = sbr.rel (%p815) target = $region68
      $region67: #{pinn_forward.1} parent=63 // pred_region
        %p818 = scmp.lt.s32.totalorder %s21, 2
        %s819 = scalar_select %p818, %s21, 2
        %s820 = smul.addr %s819, 2
        %s821 = scalar_lea.vmem %s9, %s820
      $region68: #{pinn_forward.1} parent=63 // pred_fallthru
        _
    $region64: #{pinn_forward.1} parent=5 // pred_fallthru
      _
  $region6: #{pinn_forward.1} parent=0 // loop_footer
    %s19 = sadd.s32 1, %s15
  $region7: #{pinn_forward.1} parent=0 // loop_footer_branch
    %14 = sbr.rel target = $region3
  $region8: #{pinn_forward.1} parent=0 // loop_exit
    _

</llo_original>
